<compile_context>
chip_gen: v7x
topology: tpu7x:2x2x1
jax: 0.10.0
libtpu: 0.0.40
codegen_flags: <defaults>
</compile_context>

<pallas_src>
import jax
import jax.numpy as jnp
from jax.experimental import pallas as pl
from jax.experimental.pallas import tpu as pltpu


def _round_up(n: int, m: int) -> int:
    return ((n + m - 1) // m) * m


def _sublane_multiple(dtype) -> int:
    # f32 -> 8, bf16 -> 16, int8/fp8 -> 32 (sub-32-bit dtypes pack along sublanes).
    return max(8, 32 // jnp.dtype(dtype).itemsize)


def _pick_tile(total: int, requested: int, align: int) -> int:
    """Largest multiple of `align` that is <= requested and divides `total`
    (total must itself be a multiple of `align`)."""
    t = min(requested, total)
    t = max(align, (t // align) * align)
    while total % t:
        t -= align
    return t


# ----------------------------------------------------------------------------
# Kernels
# ----------------------------------------------------------------------------
def _swigluffn_kernel_f32(x_ref, w_ref, b_ref, o_ref):
    # x_ref: (tm, tk)   token tile
    # w_ref: (tk, tn)   fused weight tile, already in canonical (K, 2N) layout
    # b_ref: (1, tn)    fused bias tile (f32)
    # o_ref: (tm, tn)   f32 output tile; doubles as the K-reduction accumulator
    #                   (its index_map ignores k, so it stays VMEM-resident).
    @pl.when(pl.program_id(2) == 0)
    def _init():
        o_ref[...] = jnp.broadcast_to(b_ref[...].astype(jnp.float32), o_ref.shape)

    o_ref[...] += jnp.dot(x_ref[...], w_ref[...], preferred_element_type=jnp.float32)


def _swigluffn_kernel_acc(x_ref, w_ref, b_ref, o_ref, acc_ref):
    # Same as above, but with an f32 VMEM accumulator so the (narrow-dtype)
    # output is only written once, downcast, in the finalize step.
    k = pl.program_id(2)

    @pl.when(k == 0)
    def _init():
        acc_ref[...] = jnp.broadcast_to(b_ref[...].astype(jnp.float32), acc_ref.shape)

    acc_ref[...] += jnp.dot(x_ref[...], w_ref[...], preferred_element_type=jnp.float32)

    @pl.when(k == pl.num_programs(2) - 1)
    def _finalize():
        o_ref[...] = acc_ref[...].astype(o_ref.dtype)


# ----------------------------------------------------------------------------
# One-time parameter fuse (do this at parameter-load time, NOT per forward)
# ----------------------------------------------------------------------------
def fuse_split_swiglu_params(w1, b1, w2, b2, *, weight_dtype=None,
                             lane_align=128, k_align=128):
    """Fuse the two torch-layout Linear params ONCE:
       * concat along output features -> (2N, K),
       * one-time transpose to the canonical MXU RHS layout (K, 2N),
       * one-time zero-pad of K and 2N to tile multiples (so forwards never
         pad / copy the weight),
       * optional downcast of the weight (e.g. bf16 for decode); bias stays f32.
    Returns (w_t [Kp, 2Np], b [1, 2Np] f32, n2) with n2 = 2 * out_features."""
    w = jnp.concatenate([w1, w2], axis=0)            # (2N, K), torch layout
    b = jnp.concatenate([b1, b2], axis=0)            # (2N,)
    n2, k = w.shape
    kp = _round_up(k, k_align)
    n2p = _round_up(n2, lane_align)
    w_t = w.T                                        # (K, 2N): one-time transpose
    if (kp, n2p) != (k, n2):
        w_t = jnp.pad(w_t, ((0, kp - k), (0, n2p - n2)))
        b = jnp.pad(b, (0, n2p - n2))
    if weight_dtype is not None:
        w_t = w_t.astype(weight_dtype)
    return w_t, b.astype(jnp.float32).reshape(1, -1), n2


# ----------------------------------------------------------------------------
# Forward
# ----------------------------------------------------------------------------
def split_swigluffn_fused(x, w_t, b, n2=None, *, tm=512, tn=512, tk=512):
    """x: [..., K]; w_t: [Kp, 2Np] pre-fused / pre-transposed / pre-padded
    weight from fuse_split_swiglu_params; b: [1, 2Np] f32 bias; n2: true output
    width (defaults to 2Np).  Returns [..., n2] ==
    concat([x @ W1^T + b1, x @ W2^T + b2], -1)."""
    K = x.shape[-1]
    Kp, N2p = w_t.shape
    assert Kp >= K, f"padded weight K ({Kp}) must be >= x K ({K})"
    if n2 is None:
        n2 = N2p
    lead = x.shape[:-1]
    x2d = x.reshape(-1, K)
    M = x2d.shape[0]
    out_dtype = x.dtype

    # ---- tile selection ------------------------------------------------------
    sub = _sublane_multiple(x.dtype)
    tn = _pick_tile(N2p, max(tn, 128), 128)
    tk = _pick_tile(Kp, max(tk, 128), 128)
    if M >= tm:
        tm = _round_up(tm, sub)
        Mp = _round_up(M, tm)
    else:
        # Small-M / decode: a single dtype-aligned token tile.
        tm = _round_up(max(M, 1), sub)
        Mp = tm
        # Keep >=2 blocks on a "parallel" axis so both v7x TensorCores get work.
        if N2p // tn < 2 and N2p >= 256:
            tn = _pick_tile(N2p, N2p // 2, 128)

    m_blocks, n_blocks, k_blocks = Mp // tm, N2p // tn, Kp // tk
    grid = (m_blocks, n_blocks, k_blocks)

    # ---- per-call padding of x only (weight/bias were padded at load time) --
    if (Mp, Kp) != (M, K):
        x2d = jnp.pad(x2d, ((0, Mp - M), (0, Kp - K)))

    # ---- block specs ---------------------------------------------------------
    x_spec = pl.BlockSpec((tm, tk), lambda i, j, k: (i, k))
    # Small-M regime can be DMA-latency bound on the weight stream: 3-deep buffer.
    if m_blocks == 1 and k_blocks >= 2:
        w_spec = pl.BlockSpec((tk, tn), lambda i, j, k: (k, j),
                              pipeline_mode=pl.Buffered(3))
        w_bufs = 3
    else:
        w_spec = pl.BlockSpec((tk, tn), lambda i, j, k: (k, j))
        w_bufs = 2
    b_spec = pl.BlockSpec((1, tn), lambda i, j, k: (0, j))
    o_spec = pl.BlockSpec((tm, tn), lambda i, j, k: (i, j))

    use_scratch = out_dtype != jnp.float32
    kernel = _swigluffn_kernel_acc if use_scratch else _swigluffn_kernel_f32
    scratch = [pltpu.VMEM((tm, tn), jnp.float32)] if use_scratch else []

    # ---- cost estimate (includes tiling re-read factors) ---------------------
    xsz = jnp.dtype(x.dtype).itemsize
    wsz = jnp.dtype(w_t.dtype).itemsize
    osz = jnp.dtype(out_dtype).itemsize
    cost = pl.CostEstimate(
        flops=2 * Mp * Kp * N2p,
        transcendentals=0,
        bytes_accessed=(Mp * Kp * xsz * n_blocks      # x re-read per n tile
                        + Kp * N2p * wsz * m_blocks   # w re-read per m tile
                        + N2p * 4 * m_blocks          # bias
                        + Mp * N2p * osz),            # output
    )

    # ---- VMEM budget: double-buffered tiles + accumulator + headroom ---------
    footprint = (2 * tm * tk * xsz + w_bufs * tk * tn * wsz + 2 * tn * 4
                 + 2 * tm * tn * osz + (tm * tn * 4 if use_scratch else 0))
    vmem_limit = int(min(128 << 20, max(32 << 20, footprint * 3 // 2)))

    out = pl.pallas_call(
        kernel,
        out_shape=jax.ShapeDtypeStruct((Mp, N2p), out_dtype),
        grid_spec=pltpu.PrefetchScalarGridSpec(
            num_scalar_prefetch=0,
            grid=grid,
            in_specs=[x_spec, w_spec, b_spec],
            out_specs=o_spec,
            scratch_shapes=scratch,
        ),
        compiler_params=pltpu.CompilerParams(
            dimension_semantics=("parallel", "parallel", "arbitrary"),
            vmem_limit_bytes=vmem_limit,
        ),
        cost_estimate=cost,
    )(x2d, w_t, b)

    if (Mp, N2p) != (M, n2):
        out = out[:M, :n2]
    return out.reshape(*lead, n2)


def split_swigluffn(x, w1, b1, w2, b2, **tile_kwargs):
    """Convenience wrapper taking the unfused torch-layout params. In a real
    model, hoist fuse_split_swiglu_params to parameter-load time so the fuse,
    transpose, and padding are not re-done on every forward call."""
    w_t, b, n2 = fuse_split_swiglu_params(w1, b1, w2, b2)
    return split_swigluffn_fused(x, w_t, b, n2, **tile_kwargs)


if __name__ == "__main__":
    # Small shapes consistent with the module.
    batch, seq = 2, 8
    in_features, out_features = 32, 32

    key = jax.random.PRNGKey(0)
    kx, kw1, kb1, kw2, kb2 = jax.random.split(key, 5)

    x = jax.random.normal(kx, (batch, seq, in_features), dtype=jnp.float32)
    # torch nn.Linear weight layout: (out_features, in_features)
    w1 = jax.random.normal(kw1, (out_features, in_features), dtype=jnp.float32) * 0.05
    b1 = jax.random.normal(kb1, (out_features,), dtype=jnp.float32) * 0.05
    w2 = jax.random.normal(kw2, (out_features, in_features), dtype=jnp.float32) * 0.05
    b2 = jax.random.normal(kb2, (out_features,), dtype=jnp.float32) * 0.05

    # Reference (plain JAX) == module semantics.
    ref = jnp.concatenate([x @ w1.T + b1, x @ w2.T + b2], axis=-1)

    # --- f32 path (direct output accumulation, no scratch) -------------------
    w_fused, b_fused, n2 = fuse_split_swiglu_params(w1, b1, w2, b2)
    y = split_swigluffn_fused(x, w_fused, b_fused, n2)
    y = jax.block_until_ready(y)
    assert y.shape == (batch, seq, 2 * out_features)
    assert jnp.allclose(y, ref, atol=1e-5, rtol=1e-5), float(jnp.max(jnp.abs(y - ref)))

    # --- bf16 path (exercises the f32-scratch kernel + bf16 weights) ---------
    w_bf, b_bf, n2_bf = fuse_split_swiglu_params(w1, b1, w2, b2,
                                                 weight_dtype=jnp.bfloat16)
    y_bf = split_swigluffn_fused(x.astype(jnp.bfloat16), w_bf, b_bf, n2_bf)
    y_bf = jax.block_until_ready(y_bf)
    assert y_bf.shape == (batch, seq, 2 * out_features)
    assert jnp.allclose(y_bf.astype(jnp.float32), ref, atol=3e-2, rtol=3e-2)

    print("KERNEL_OK")
</pallas_src>

<mosaic_0001>
module attributes {stable_mosaic.version = 11 : i64} {
  func.func @_swigluffn_kernel_f32(%arg0: i32, %arg1: i32, %arg2: i32, %arg3: memref<16x128xf32, #tpu.memory_space<vmem>>, %arg4: memref<128x128xf32, #tpu.memory_space<vmem>>, %arg5: memref<1x128xf32, #tpu.memory_space<vmem>>, %arg6: memref<16x128xf32, #tpu.memory_space<vmem>>) attributes {dimension_semantics = [#tpu.dimension_semantics<parallel>, #tpu.dimension_semantics<parallel>, #tpu.dimension_semantics<arbitrary>], iteration_bounds = array<i64: 1, 1, 1>, scalar_prefetch = 0 : i64, scratch_operands = 0 : i64, tpu.core_type = #tpu.core_type<tc>, window_params = [{transform_indices = @transform_0, window_bounds = array<i64: 16, 128>}, {transform_indices = @transform_1, window_bounds = array<i64: 128, 128>}, {transform_indices = @transform_2, window_bounds = array<i64: 1, 128>}, {transform_indices = @transform_3, window_bounds = array<i64: 16, 128>}]} {
    %c0_i32 = arith.constant 0 : i32
    %0 = arith.cmpi eq, %arg2, %c0_i32 : i32
    %1 = arith.extui %0 : i1 to i32
    %c0_i32_0 = arith.constant 0 : i32
    %2 = arith.cmpi ne, %1, %c0_i32_0 : i32
    scf.if %2 {
      %c0_8 = arith.constant 0 : index
      %c0_9 = arith.constant 0 : index
      %9 = vector.load %arg5[%c0_8, %c0_9] : memref<1x128xf32, #tpu.memory_space<vmem>>, vector<1x128xf32>
      %10 = vector.shape_cast %9 : vector<1x128xf32> to vector<1x128xf32>
      %11 = vector.broadcast %10 : vector<1x128xf32> to vector<16x128xf32>
      %c0_10 = arith.constant 0 : index
      %c0_11 = arith.constant 0 : index
      %12 = vector.load %arg6[%c0_10, %c0_11] : memref<16x128xf32, #tpu.memory_space<vmem>>, vector<16x128xf32>
      tpu.vector_store %arg6[%c0_10, %c0_11], %11 {strides = array<i32>} : memref<16x128xf32, #tpu.memory_space<vmem>>, vector<16x128xf32>,
    } else {
    }
    %c0 = arith.constant 0 : index
    %c0_1 = arith.constant 0 : index
    %3 = vector.load %arg6[%c0, %c0_1] : memref<16x128xf32, #tpu.memory_space<vmem>>, vector<16x128xf32>
    %c0_2 = arith.constant 0 : index
    %c0_3 = arith.constant 0 : index
    %4 = vector.load %arg3[%c0_2, %c0_3] : memref<16x128xf32, #tpu.memory_space<vmem>>, vector<16x128xf32>
    %c0_4 = arith.constant 0 : index
    %c0_5 = arith.constant 0 : index
    %5 = vector.load %arg4[%c0_4, %c0_5] : memref<128x128xf32, #tpu.memory_space<vmem>>, vector<128x128xf32>
    %cst = arith.constant dense<0.000000e+00> : vector<16x128xf32>
    %6 = tpu.matmul %4, %5, %cst {dimension_numbers = #tpu.dot_dimension_numbers<[1], [0], [0], [1], [0, 0, 1, 1], [], []>} : vector<16x128xf32>, vector<128x128xf32>, vector<16x128xf32> -> vector<16x128xf32>
    %7 = arith.addf %3, %6 : vector<16x128xf32>
    %c0_6 = arith.constant 0 : index
    %c0_7 = arith.constant 0 : index
    %8 = vector.load %arg6[%c0_6, %c0_7] : memref<16x128xf32, #tpu.memory_space<vmem>>, vector<16x128xf32>
    tpu.vector_store %arg6[%c0_6, %c0_7], %7 {strides = array<i32>} : memref<16x128xf32, #tpu.memory_space<vmem>>, vector<16x128xf32>,
    return
  }
  func.func @transform_0(%arg0: i32, %arg1: i32, %arg2: i32) -> (i32, i32) {
    %c0_i32 = arith.constant 0 : i32
    return %arg0, %arg2 : i32, i32
  }
  func.func @transform_1(%arg0: i32, %arg1: i32, %arg2: i32) -> (i32, i32) {
    %c0_i32 = arith.constant 0 : i32
    return %arg2, %arg1 : i32, i32
  }
  func.func @transform_2(%arg0: i32, %arg1: i32, %arg2: i32) -> (i32, i32) {
    %c0_i32 = arith.constant 0 : i32
    %c0_i32_0 = arith.constant 0 : i32
    return %c0_i32, %arg1 : i32, i32
  }
  func.func @transform_3(%arg0: i32, %arg1: i32, %arg2: i32) -> (i32, i32) {
    %c0_i32 = arith.constant 0 : i32
    return %arg0, %arg1 : i32, i32
  }
}

</mosaic_0001>

<llo_original>
// kernel: tpu_custom_call.1
$region0: #{tpu_custom_call.1}
  #allocation0 [shape = 'u32[]', space=smem, size = 0x4, offset = 0x4, fixed_abs, tag = 'smem constant byte address 0x4 - core index']
  #allocation1 [shape = 'u32[144,128]{1,0:T(1,128)}', space=vmem, size = 0x12000, scoped, tag = 'internal scratch']
  %s0 = inlined_call_operand.hbm [shape: f32[16,128], index: 0, kind: input, shape index: {}]
  %s1 = inlined_call_operand.hbm [shape: f32[128,128], index: 1, kind: input, shape index: {}]
  %s2 = inlined_call_operand.vmem [shape: f32[1,128], index: 2, kind: input, shape index: {}]
  %s3 = inlined_call_operand.hbm [shape: f32[16,128], index: 3, kind: output, shape index: {}]
  %s4 = sld [smem:[#allocation0]]
  $region34: #{tpu_custom_call.1} parent=0
    _
  %s6 = ssub.s32 1, %s4
  %s7 = scalar_select 0, %s6, %s4
  $region1: #{tpu_custom_call.1} parent=0
    #allocation2 [shape = 'u8[8192]{0}', space=vmem, size = 0x2000, scoped, tag = 'input window, operand 0, single buffered']
    #allocation3 [shape = 's32[1]{0}', space=sflag, size = 0x4, scoped, tag = 'scoped memory for tpu_custom_call.1']
    #allocation4 [shape = 's32[1]{0}', space=sflag, size = 0x4, scoped, tag = 'scoped memory for tpu_custom_call.1']
    #allocation5 [shape = 'u8[65536]{0}', space=vmem, size = 0x10000, scoped, tag = 'input window, operand 1, single buffered']
    #allocation6 [shape = 's32[1]{0}', space=sflag, size = 0x4, scoped, tag = 'scoped memory for tpu_custom_call.1']
    #allocation7 [shape = 'u8[8192]{0}', space=vmem, size = 0x2000, scoped, tag = 'output window, operand 0, single buffered']
    %8 = vsyncpa [#allocation3], 0
    %9 = vsyncpa [#allocation6], 0
    %10 = vsyncpa [#allocation4], 0
    // Predicated region
    $region2: #{tpu_custom_call.1} parent=1 // pred_check
      _
    $region3: #{tpu_custom_call.1} parent=1 // pred_check_branch
      %12 = sbr.rel (0) target = $region5
    $region4: #{tpu_custom_call.1} parent=1 // pred_region
      %s14 = ssub.s32 256, 256
      %15 = vsyncadd [#allocation3], %s14
      %s16 = sshll.u32 [#allocation2], 4
      %s17 = int_to_ptr.vmem [resolvable:$true] %s16
      %22 = dma.hbm_to_vmem [thread:$0]  %s0, 256, %s17, [#allocation3], 128, 128, 8
    $region5: #{tpu_custom_call.1} parent=1 // pred_fallthru
      _
    // Predicated region
    $region6: #{tpu_custom_call.1} parent=1 // pred_check
      _
    $region7: #{tpu_custom_call.1} parent=1 // pred_check_branch
      %24 = sbr.rel (0) target = $region9
    $region8: #{tpu_custom_call.1} parent=1 // pred_region
      %s26 = ssub.s32 2048, 2048
      %27 = vsyncadd [#allocation6], %s26
      %s28 = sshll.u32 [#allocation5], 4
      %s29 = int_to_ptr.vmem [resolvable:$true] %s28
      %34 = dma.hbm_to_vmem [thread:$0]  %s1, 2048, %s29, [#allocation6], 128, 128, 8
    $region9: #{tpu_custom_call.1} parent=1 // pred_fallthru
      _
    // Predicated region
    $region10: #{tpu_custom_call.1} parent=1 // pred_check
      _
    $region11: #{tpu_custom_call.1} parent=1 // pred_check_branch
      %36 = sbr.rel (0) target = $region13
    $region12: #{tpu_custom_call.1} parent=1 // pred_region
      _
    $region13: #{tpu_custom_call.1} parent=1 // pred_fallthru
      _
    // Predicated region
    $region14: #{tpu_custom_call.1} parent=1 // pred_check
      _
    $region15: #{tpu_custom_call.1} parent=1 // pred_check_branch
      %38 = sbr.rel (0) target = $region17
    $region16: #{tpu_custom_call.1} parent=1 // pred_region
      %39 = dma.done [#allocation3], 256
    $region17: #{tpu_custom_call.1} parent=1 // pred_fallthru
      _
    // Predicated region
    $region18: #{tpu_custom_call.1} parent=1 // pred_check
      _
    $region19: #{tpu_custom_call.1} parent=1 // pred_check_branch
      %41 = sbr.rel (0) target = $region21
    $region20: #{tpu_custom_call.1} parent=1 // pred_region
      %42 = dma.done [#allocation6], 2048
    $region21: #{tpu_custom_call.1} parent=1 // pred_fallthru
      _
    %p43 = scmp.eq.s32.totalorder 0, 0
    // Predicated region
    $region22: #{tpu_custom_call.1} parent=1 // pred_check
      %p44 = pneg %p43
    $region23: #{tpu_custom_call.1} parent=1 // pred_check_branch
      %46 = sbr.rel (%p44) target = $region25
    $region24: #{tpu_custom_call.1} parent=1 // pred_region
      %v47 = vld [vmem:[%s2] sm:$0x1]
      %v49 = vlaneseq
      %v50 = vshrl.u32 %v49, 7
      %v51 = vsub.s32 0, %v50
      %v52 = vrot.slane %v47, %v51
      %54 = vst [vmem:[#allocation7] sm:$0xff] %v52
      %55 = vst [vmem:[#allocation7 + $0x8] sm:$0xff] %v52
    $region25: #{tpu_custom_call.1} parent=1 // pred_fallthru
      _
    %v56 = vld [vmem:[#allocation7] sm:$0xff]
    %v57 = vld [vmem:[#allocation7 + $0x8] sm:$0xff]
    %v58 = vld [vmem:[#allocation2] sm:$0xff]
    %v59 = vld [vmem:[#allocation2 + $0x8] sm:$0xff]
    %v60 = vld [vmem:[#allocation5] sm:$0xff]
    %v61 = vld [vmem:[#allocation5 + $0x8] sm:$0xff]
    %v62 = vld [vmem:[#allocation5 + $0x10] sm:$0xff]
    %v63 = vld [vmem:[#allocation5 + $0x18] sm:$0xff]
    %v64 = vld [vmem:[#allocation5 + $0x20] sm:$0xff]
    %v65 = vld [vmem:[#allocation5 + $0x28] sm:$0xff]
    %v66 = vld [vmem:[#allocation5 + $0x30] sm:$0xff]
    %v67 = vld [vmem:[#allocation5 + $0x38] sm:$0xff]
    %v68 = vld [vmem:[#allocation5 + $0x40] sm:$0xff]
    %v69 = vld [vmem:[#allocation5 + $0x48] sm:$0xff]
    %v70 = vld [vmem:[#allocation5 + $0x50] sm:$0xff]
    %v71 = vld [vmem:[#allocation5 + $0x58] sm:$0xff]
    %v72 = vld [vmem:[#allocation5 + $0x60] sm:$0xff]
    %v73 = vld [vmem:[#allocation5 + $0x68] sm:$0xff]
    %v74 = vld [vmem:[#allocation5 + $0x70] sm:$0xff]
    %v75 = vld [vmem:[#allocation5 + $0x78] sm:$0xff]
    %76 = vmatprep.subr.mxu0 0.0
    %77 = vmatpush1.msra.mxu0 %v60
    %78 = vmatprep.subr.mxu0 0.0
    %79 = vmatpush1.msra.mxu0 %v61
    %80 = vmatprep.subr.mxu0 0.0
    %81 = vmatpush1.msra.mxu0 %v62
    %82 = vmatprep.subr.mxu0 0.0
    %83 = vmatpush1.msra.mxu0 %v63
    %84 = vmatprep.subr.mxu0 0.0
    %85 = vmatpush1.msra.mxu0 %v64
    %86 = vmatprep.subr.mxu0 0.0
    %87 = vmatpush1.msra.mxu0 %v65
    %88 = vmatprep.subr.mxu0 0.0
    %89 = vmatpush1.msra.mxu0 %v66
    %90 = vmatprep.subr.mxu0 0.0
    %91 = vmatpush1.msra.mxu0 %v67
    %92 = vmatprep.subr.mxu0 0.0
    %93 = vmatpush1.msra.mxu0 %v68
    %94 = vmatprep.subr.mxu0 0.0
    %95 = vmatpush1.msra.mxu0 %v69
    %96 = vmatprep.subr.mxu0 0.0
    %97 = vmatpush1.msra.mxu0 %v70
    %98 = vmatprep.subr.mxu0 0.0
    %99 = vmatpush1.msra.mxu0 %v71
    %100 = vmatprep.subr.mxu0 0.0
    %101 = vmatpush1.msra.mxu0 %v72
    %102 = vmatprep.subr.mxu0 0.0
    %103 = vmatpush1.msra.mxu0 %v73
    %104 = vmatprep.subr.mxu0 0.0
    %105 = vmatpush1.msra.mxu0 %v74
    %106 = vmatprep.subr.mxu0 0.0
    %107 = vmatpush1.msra.mxu0 %v75
    %108 = vmatprep.subr.mxu0 0.0
    %109 = vmatpush1.msra.mxu0 0.0
    %110 = vmatprep.subr.mxu0 0.0
    %111 = vmatpush1.msra.mxu0 0.0
    %112 = vmatprep.subr.mxu0 0.0
    %113 = vmatpush1.msra.mxu0 0.0
    %114 = vmatprep.subr.mxu0 0.0
    %115 = vmatpush1.msra.mxu0 0.0
    %116 = vmatprep.subr.mxu0 0.0
    %117 = vmatpush1.msra.mxu0 0.0
    %118 = vmatprep.subr.mxu0 0.0
    %119 = vmatpush1.msra.mxu0 0.0
    %120 = vmatprep.subr.mxu0 0.0
    %121 = vmatpush1.msra.mxu0 0.0
    %122 = vmatprep.subr.mxu0 0.0
    %123 = vmatpush1.msra.mxu0 0.0
    %124 = vmatprep.subr.mxu0 0.0
    %125 = vmatpush1.msra.mxu0 0.0
    %126 = vmatprep.subr.mxu0 0.0
    %127 = vmatpush1.msra.mxu0 0.0
    %128 = vmatprep.subr.mxu0 0.0
    %129 = vmatpush1.msra.mxu0 0.0
    %130 = vmatprep.subr.mxu0 0.0
    %131 = vmatpush1.msra.mxu0 0.0
    %132 = vmatprep.subr.mxu0 0.0
    %133 = vmatpush1.msra.mxu0 0.0
    %134 = vmatprep.subr.mxu0 0.0
    %135 = vmatpush1.msra.mxu0 0.0
    %136 = vmatprep.subr.mxu0 0.0
    %137 = vmatpush1.msra.mxu0 0.0
    %138 = vmatprep.subr.mxu0 0.0
    %139 = vmatpush1.msra.mxu0 0.0
    %140 = vmatprep.mubr.f32.mxu0 0.0
    %141 = vmatmul.mubr.f32.gmra.mrb[0].mxu0 %v58
    %v142 = vpop.f32.mrb[0].mxu0
    %v143 = vadd.f32 0.0, %v142
    %v144 = vpop.f32.mrb[0].mxu0
    %145 = vmatprep.mubr.f32.mxu0 0.0
    %146 = vmatmul.mubr.f32.gmra.mrb[0].mxu0 %v59
    %v147 = vpop.f32.mrb[0].mxu0
    %v148 = vadd.f32 0.0, %v147
    %v149 = vpop.f32.mrb[0].mxu0
    %150 = vdwg.mxu0
    %v151 = vadd.f32 %v56, %v143
    %v152 = vadd.f32 %v57, %v148
    %153 = vst [vmem:[#allocation7] sm:$0xff] %v151
    %154 = vst [vmem:[#allocation7 + $0x8] sm:$0xff] %v152
    // Predicated region
    $region26: #{tpu_custom_call.1} parent=1 // pred_check
      _
    $region27: #{tpu_custom_call.1} parent=1 // pred_check_branch
      %156 = sbr.rel (0) target = $region29
    $region28: #{tpu_custom_call.1} parent=1 // pred_region
      %s158 = ssub.s32 256, 256
      %159 = vsyncadd [#allocation4], %s158
      %s160 = sshll.u32 [#allocation7], 4
      %s161 = int_to_ptr.vmem [resolvable:$true] %s160
      %166 = dma.vmem_to_hbm [thread:$0]  %s161, 256, %s3, [#allocation4], 128, 128, 8
    $region29: #{tpu_custom_call.1} parent=1 // pred_fallthru
      _
    // Predicated region
    $region30: #{tpu_custom_call.1} parent=1 // pred_check
      _
    $region31: #{tpu_custom_call.1} parent=1 // pred_check_branch
      %168 = sbr.rel (0) target = $region33
    $region32: #{tpu_custom_call.1} parent=1 // pred_region
      %169 = dma.done [#allocation4], 256
    $region33: #{tpu_custom_call.1} parent=1 // pred_fallthru
      _
    %170 = vsyncpa [#allocation3], 1
    %171 = vsyncpa [#allocation6], 1
    %172 = vsyncpa [#allocation4], 1

</llo_original>
